<compile_context>
chip_gen: v5e
topology: v5e:2x2
jax: 0.10.0
libtpu: 0.0.40
codegen_flags: <defaults>
</compile_context>

<pallas_src>
import functools

import jax
import jax.numpy as jnp
from jax.experimental import pallas as pl
from jax.experimental.pallas import tpu as pltpu


def _round_up(x, mult):
    return (x + mult - 1) // mult * mult


def _iou_reduce_kernel(anchor_ref, gt_ref, base_ref, argmax_ref, best_ref, *,
                       thresh, n, m, tile_n):
    """Pass 1: per-anchor threshold base + cross-tile per-gt argmax reduction.

    anchor_ref : (4, tile_n) f32   anchors of this tile, coords on sublanes
    gt_ref     : (m, 4)     f32    grid-invariant, stays resident in VMEM
    base_ref   : (1, tile_n) i32   out: -1 if max-IoU < thresh else -2
    argmax_ref : (m, 1)     i32    out: global anchor index of per-gt best IoU
                                   (resident accumulator, constant index_map)
    best_ref   : (m, 1)     f32    scratch: running per-gt best IoU
    """
    i = pl.program_id(0)

    @pl.when(i == 0)
    def _():
        best_ref[...] = jnp.full_like(best_ref, -jnp.inf)
        argmax_ref[...] = jnp.zeros_like(argmax_ref)

    # Hoisted coordinate slices (anchors on lanes, gts on sublanes).
    ax1 = anchor_ref[0:1, :]          # (1, tile_n)
    ay1 = anchor_ref[1:2, :]
    ax2 = anchor_ref[2:3, :]
    ay2 = anchor_ref[3:4, :]

    gx1 = gt_ref[:, 0:1]              # (m, 1)
    gy1 = gt_ref[:, 1:2]
    gx2 = gt_ref[:, 2:3]
    gy2 = gt_ref[:, 3:4]

    # Pairwise IoU, shape (m, tile_n)  (== iou_mat.T w.r.t. the torch code).
    iw = jnp.maximum(jnp.minimum(ax2, gx2) - jnp.maximum(ax1, gx1), 0.0)
    ih = jnp.maximum(jnp.minimum(ay2, gy2) - jnp.maximum(ay1, gy1), 0.0)
    inter = iw * ih                                   # (m, tile_n)
    area_a = (ax2 - ax1) * (ay2 - ay1)                # (1, tile_n)
    area_g = (gx2 - gx1) * (gy2 - gy1)                # (m, 1)
    union = area_a + area_g - inter                   # (m, tile_n)
    # EUP reciprocal instead of a per-element VALU divide (this kernel has no
    # MXU work and is VALU-bound).  approx=True would be cheaper still, at the
    # cost of ~2^-12 IoU error (possible tie flips).
    iou = inter * pl.reciprocal(union, approx=False)  # (m, tile_n)
    # TODO(synk): degenerate zero-area anchor+gt pairs give union==0 -> NaN IoU,
    # same as the torch/bbox_overlaps-without-eps behavior assumed here.

    # torch.max(iou_mat, dim=1): per-anchor max over gts -> base value.
    anchor_max = jnp.max(iou, axis=0, keepdims=True)  # (1, tile_n)
    base_ref[...] = jnp.where(anchor_max < jnp.float32(thresh),
                              jnp.int32(-1), jnp.int32(-2))

    # Global anchor index of every lane; mask lanes past N (padding of the last
    # tile) so they can never win the per-gt argmax.
    lane = jax.lax.broadcasted_iota(jnp.int32, (1, tile_n), 1)
    global_idx = i * tile_n + lane                    # (1, tile_n)
    valid = global_idx < n
    iou_m = jnp.where(valid, iou, -jnp.inf)           # (m, tile_n)

    # torch.max(iou_mat, dim=0): per-gt argmax over anchors, first index on
    # ties.  Tile-local result expressed in *global* anchor indices.
    tile_max = jnp.max(iou_m, axis=1, keepdims=True)                 # (m, 1)
    cand = jnp.where(iou_m == tile_max, global_idx, jnp.int32(n))    # (m, tile_n)
    tile_arg = jnp.min(cand, axis=1, keepdims=True)                  # (m, 1)

    # Cross-tile carry: strictly-greater keeps the earliest (lowest-index) tile
    # on exact ties, matching argmax's first-index tie-break.
    better = tile_max > best_ref[...]
    best_ref[...] = jnp.where(better, tile_max, best_ref[...])
    argmax_ref[...] = jnp.where(better, tile_arg, argmax_ref[...])


def _scatter_kernel(argmax_ref, base_ref, out_ref, *, m, tile_n):
    """Pass 2: assign_index[argmax[j]] = j (largest j wins), else base value."""
    i = pl.program_id(0)
    global_idx = i * tile_n + jax.lax.broadcasted_iota(jnp.int32, (1, tile_n), 1)
    j_iota = jax.lax.broadcasted_iota(jnp.int32, (m, 1), 0)
    chosen = argmax_ref[...] == global_idx                           # (m, tile_n)
    gt_for_anchor = jnp.max(jnp.where(chosen, j_iota, jnp.int32(-1)),
                            axis=0, keepdims=True)                   # (1, tile_n)
    out_ref[...] = jnp.where(gt_for_anchor >= 0, gt_for_anchor, base_ref[...])


def assign_yolo(anchor, gt, thresh=0.3, tile_n=None):
    """anchor: (N, 4) float32, gt: (M, 4) float32 -> (N,) int32 assignment."""
    n = anchor.shape[0]
    m = gt.shape[0]

    # Anchor-tile width: multiple of 128 (lane-dense stores), capped at 1024 so
    # (m, tile_n) intermediates stay small even under v5e's 16 MiB scoped VMEM
    # and v7x's 64 MiB physical VMEM.  Sweep 1024-4096 for big M*N if needed.
    if tile_n is None:
        tile_n = min(1024, _round_up(n, 128))
    tile_n = _round_up(tile_n, 128)
    n_pad = _round_up(n, tile_n)
    num_tiles = n_pad // tile_n

    # Anchors on the lane axis; pad to a whole number of tiles (padded lanes
    # are masked inside the kernel).
    anchor_t = jnp.pad(anchor.T.astype(jnp.float32), ((0, 0), (0, n_pad - n)))
    gt_f = gt.astype(jnp.float32)

    # Pass 1: tiled IoU, per-anchor base, per-gt global argmax (reduction over
    # the N axis -> "arbitrary").
    base, gt_argmax = pl.pallas_call(
        functools.partial(_iou_reduce_kernel, thresh=float(thresh),
                          n=n, m=m, tile_n=tile_n),
        grid=(num_tiles,),
        in_specs=[
            pl.BlockSpec((4, tile_n), lambda i: (0, i)),
            pl.BlockSpec((m, 4), lambda i: (0, 0)),      # grid-invariant gt block
        ],
        out_specs=[
            pl.BlockSpec((1, tile_n), lambda i: (0, i)),
            pl.BlockSpec((m, 1), lambda i: (0, 0)),      # resident accumulator
        ],
        out_shape=[
            jax.ShapeDtypeStruct((1, n_pad), jnp.int32),
            jax.ShapeDtypeStruct((m, 1), jnp.int32),
        ],
        scratch_shapes=[pltpu.VMEM((m, 1), jnp.float32)],
        compiler_params=pltpu.CompilerParams(
            dimension_semantics=("arbitrary",)),
        cost_estimate=pl.CostEstimate(
            flops=30 * m * n,
            transcendentals=m * n,
            bytes_accessed=4 * (4 * n + 4 * m + n + m)),
    )(anchor_t, gt_f)

    # Pass 2: independent per-tile scatter/combine ("parallel" -> v7x megacore).
    out = pl.pallas_call(
        functools.partial(_scatter_kernel, m=m, tile_n=tile_n),
        grid=(num_tiles,),
        in_specs=[
            pl.BlockSpec((m, 1), lambda i: (0, 0)),
            pl.BlockSpec((1, tile_n), lambda i: (0, i)),
        ],
        out_specs=pl.BlockSpec((1, tile_n), lambda i: (0, i)),
        out_shape=jax.ShapeDtypeStruct((1, n_pad), jnp.int32),
        compiler_params=pltpu.CompilerParams(
            dimension_semantics=("parallel",)),
        cost_estimate=pl.CostEstimate(
            flops=3 * m * n,
            transcendentals=0,
            bytes_accessed=4 * (n + m + n)),
    )(gt_argmax, base)

    return out[0, :n]


def _assign_yolo_ref(anchor, gt, thresh=0.3):
    """Pure-JAX reference mirroring the torch module (for validation)."""
    ax1, ay1, ax2, ay2 = [anchor[:, k] for k in range(4)]
    gx1, gy1, gx2, gy2 = [gt[:, k] for k in range(4)]
    iw = jnp.maximum(
        jnp.minimum(ax2[:, None], gx2[None, :]) - jnp.maximum(ax1[:, None], gx1[None, :]), 0.0)
    ih = jnp.maximum(
        jnp.minimum(ay2[:, None], gy2[None, :]) - jnp.maximum(ay1[:, None], gy1[None, :]), 0.0)
    inter = iw * ih
    area_a = (ax2 - ax1) * (ay2 - ay1)
    area_g = (gx2 - gx1) * (gy2 - gy1)
    union = area_a[:, None] + area_g[None, :] - inter
    iou = inter * (1.0 / union)                                    # (N, M)

    assign = jnp.full((anchor.shape[0],), -2, dtype=jnp.int32)
    assign = jnp.where(jnp.max(iou, axis=1) < thresh, -1, assign)
    anchor_for_gt = jnp.argmax(iou, axis=0)                        # (M,), first on ties
    for j in range(gt.shape[0]):                                   # later gt wins
        assign = assign.at[anchor_for_gt[j]].set(j)
    return assign


def _make_boxes(key, num, max_xy=10.0, max_wh=5.0):
    k1, k2 = jax.random.split(key)
    xy1 = jax.random.uniform(k1, (num, 2), minval=0.0, maxval=max_xy)
    wh = jax.random.uniform(k2, (num, 2), minval=1.0, maxval=max_wh)
    return jnp.concatenate([xy1, xy1 + wh], axis=-1).astype(jnp.float32)


if __name__ == "__main__":
    key = jax.random.PRNGKey(0)
    ka, kg = jax.random.split(key)
    anchor = _make_boxes(ka, 64)   # (64, 4)
    gt = _make_boxes(kg, 8)        # (8, 4)

    out = assign_yolo(anchor, gt, thresh=0.3)
    out = jax.block_until_ready(out)

    ref = _assign_yolo_ref(anchor, gt, thresh=0.3)
    assert out.shape == (64,) and out.dtype == jnp.int32
    assert bool(jnp.all(out == ref)), (out, ref)
    print("KERNEL_OK")
</pallas_src>

<mosaic_0001>
module attributes {stable_mosaic.version = 11 : i64} {
  func.func @_iou_reduce_kernel(%arg0: i32, %arg1: memref<4x128xf32, #tpu.memory_space<vmem>>, %arg2: memref<8x4xf32, #tpu.memory_space<vmem>>, %arg3: memref<1x128xi32, #tpu.memory_space<vmem>>, %arg4: memref<8x1xi32, #tpu.memory_space<vmem>>, %arg5: memref<8x1xf32, #tpu.memory_space<vmem>>) attributes {dimension_semantics = [#tpu.dimension_semantics<arbitrary>], iteration_bounds = array<i64: 1>, scalar_prefetch = 0 : i64, scratch_operands = 1 : i64, tpu.core_type = #tpu.core_type<tc>, window_params = [{transform_indices = @transform_0, window_bounds = array<i64: 4, 128>}, {pipeline_mode = #tpu.pipeline_mode<synchronous>, transform_indices = @transform_1, window_bounds = array<i64: 8, 4>}, {transform_indices = @transform_2, window_bounds = array<i64: 1, 128>}, {pipeline_mode = #tpu.pipeline_mode<synchronous>, transform_indices = @transform_3, window_bounds = array<i64: 8, 1>}]} {
    %c0_i32 = arith.constant 0 : i32
    %0 = arith.cmpi eq, %arg0, %c0_i32 : i32
    %1 = arith.extui %0 : i1 to i32
    %c0_i32_0 = arith.constant 0 : i32
    %2 = arith.cmpi ne, %1, %c0_i32_0 : i32
    scf.if %2 {
      %cst_32 = arith.constant 0xFF800000 : f32
      %78 = vector.broadcast %cst_32 : f32 to vector<8x1xf32>
      %c0_33 = arith.constant 0 : index
      %c0_34 = arith.constant 0 : index
      %79 = vector.load %arg5[%c0_33, %c0_34] : memref<8x1xf32, #tpu.memory_space<vmem>>, vector<8x1xf32>
      tpu.vector_store %arg5[%c0_33, %c0_34], %78 {strides = array<i32>} : memref<8x1xf32, #tpu.memory_space<vmem>>, vector<8x1xf32>,
      %c0_i32_35 = arith.constant 0 : i32
      %80 = vector.broadcast %c0_i32_35 : i32 to vector<8x1xi32>
      %c0_36 = arith.constant 0 : index
      %c0_37 = arith.constant 0 : index
      %81 = vector.load %arg4[%c0_36, %c0_37] : memref<8x1xi32, #tpu.memory_space<vmem>>, vector<8x1xi32>
      tpu.vector_store %arg4[%c0_36, %c0_37], %80 {strides = array<i32>} : memref<8x1xi32, #tpu.memory_space<vmem>>, vector<8x1xi32>,
    } else {
    }
    %c0 = arith.constant 0 : index
    %c0_1 = arith.constant 0 : index
    %3 = vector.load %arg1[%c0, %c0_1] : memref<4x128xf32, #tpu.memory_space<vmem>>, vector<1x128xf32>
    %c1 = arith.constant 1 : index
    %c0_2 = arith.constant 0 : index
    %4 = vector.load %arg1[%c1, %c0_2] : memref<4x128xf32, #tpu.memory_space<vmem>>, vector<1x128xf32>
    %c2 = arith.constant 2 : index
    %c0_3 = arith.constant 0 : index
    %5 = vector.load %arg1[%c2, %c0_3] : memref<4x128xf32, #tpu.memory_space<vmem>>, vector<1x128xf32>
    %c3 = arith.constant 3 : index
    %c0_4 = arith.constant 0 : index
    %6 = vector.load %arg1[%c3, %c0_4] : memref<4x128xf32, #tpu.memory_space<vmem>>, vector<1x128xf32>
    %c0_5 = arith.constant 0 : index
    %c0_6 = arith.constant 0 : index
    %7 = vector.load %arg2[%c0_5, %c0_6] : memref<8x4xf32, #tpu.memory_space<vmem>>, vector<8x1xf32>
    %c0_7 = arith.constant 0 : index
    %c1_8 = arith.constant 1 : index
    %8 = vector.load %arg2[%c0_7, %c1_8] : memref<8x4xf32, #tpu.memory_space<vmem>>, vector<8x1xf32>
    %c0_9 = arith.constant 0 : index
    %c2_10 = arith.constant 2 : index
    %9 = vector.load %arg2[%c0_9, %c2_10] : memref<8x4xf32, #tpu.memory_space<vmem>>, vector<8x1xf32>
    %c0_11 = arith.constant 0 : index
    %c3_12 = arith.constant 3 : index
    %10 = vector.load %arg2[%c0_11, %c3_12] : memref<8x4xf32, #tpu.memory_space<vmem>>, vector<8x1xf32>
    %11 = vector.broadcast %5 : vector<1x128xf32> to vector<8x128xf32>
    %12 = vector.broadcast %9 : vector<8x1xf32> to vector<8x128xf32>
    %13 = arith.minimumf %11, %12 : vector<8x128xf32>
    %14 = vector.broadcast %3 : vector<1x128xf32> to vector<8x128xf32>
    %15 = vector.broadcast %7 : vector<8x1xf32> to vector<8x128xf32>
    %16 = arith.maximumf %14, %15 : vector<8x128xf32>
    %17 = arith.subf %13, %16 : vector<8x128xf32>
    %cst = arith.constant 0.000000e+00 : f32
    %18 = vector.broadcast %cst : f32 to vector<8x128xf32>
    %19 = arith.maximumf %17, %18 : vector<8x128xf32>
    %20 = vector.broadcast %6 : vector<1x128xf32> to vector<8x128xf32>
    %21 = vector.broadcast %10 : vector<8x1xf32> to vector<8x128xf32>
    %22 = arith.minimumf %20, %21 : vector<8x128xf32>
    %23 = vector.broadcast %4 : vector<1x128xf32> to vector<8x128xf32>
    %24 = vector.broadcast %8 : vector<8x1xf32> to vector<8x128xf32>
    %25 = arith.maximumf %23, %24 : vector<8x128xf32>
    %26 = arith.subf %22, %25 : vector<8x128xf32>
    %cst_13 = arith.constant 0.000000e+00 : f32
    %27 = vector.broadcast %cst_13 : f32 to vector<8x128xf32>
    %28 = arith.maximumf %26, %27 : vector<8x128xf32>
    %29 = arith.mulf %19, %28 : vector<8x128xf32>
    %30 = arith.subf %5, %3 : vector<1x128xf32>
    %31 = arith.subf %6, %4 : vector<1x128xf32>
    %32 = arith.mulf %30, %31 : vector<1x128xf32>
    %33 = arith.subf %9, %7 : vector<8x1xf32>
    %34 = arith.subf %10, %8 : vector<8x1xf32>
    %35 = arith.mulf %33, %34 : vector<8x1xf32>
    %36 = vector.broadcast %32 : vector<1x128xf32> to vector<8x128xf32>
    %37 = vector.broadcast %35 : vector<8x1xf32> to vector<8x128xf32>
    %38 = arith.addf %36, %37 : vector<8x128xf32>
    %39 = arith.subf %38, %29 : vector<8x128xf32>
    %40 = tpu.reciprocal %39 : vector<8x128xf32> -> vector<8x128xf32>
    %41 = arith.mulf %29, %40 : vector<8x128xf32>
    %cst_14 = arith.constant dense<0xFF800000> : vector<128xf32>
    %42 = vector.multi_reduction <maximumf>, %41, %cst_14 [0] : vector<8x128xf32> to vector<128xf32>
    %43 = vector.shape_cast %42 : vector<128xf32> to vector<1x128xf32>
    %cst_15 = arith.constant 3.000000e-01 : f32
    %44 = vector.broadcast %cst_15 : f32 to vector<1x128xf32>
    %45 = arith.cmpf olt, %43, %44 : vector<1x128xf32>
    %c-1_i32 = arith.constant -1 : i32
    %c-2_i32 = arith.constant -2 : i32
    %46 = vector.broadcast %c-1_i32 : i32 to vector<1x128xi32>
    %47 = vector.broadcast %c-2_i32 : i32 to vector<1x128xi32>
    %48 = arith.select %45, %46, %47 : vector<1x128xi1>, vector<1x128xi32>
    %c0_16 = arith.constant 0 : index
    %c0_17 = arith.constant 0 : index
    %49 = vector.load %arg3[%c0_16, %c0_17] : memref<1x128xi32, #tpu.memory_space<vmem>>, vector<1x128xi32>
    tpu.vector_store %arg3[%c0_16, %c0_17], %48 {strides = array<i32>} : memref<1x128xi32, #tpu.memory_space<vmem>>, vector<1x128xi32>,
    %50 = tpu.iota {dimensions = array<i32: 1>} : vector<1x128xi32>
    %c128_i32 = arith.constant 128 : i32
    %51 = arith.muli %arg0, %c128_i32 : i32
    %52 = vector.broadcast %51 : i32 to vector<1x128xi32>
    %53 = arith.addi %52, %50 : vector<1x128xi32>
    %c64_i32 = arith.constant 64 : i32
    %54 = vector.broadcast %c64_i32 : i32 to vector<1x128xi32>
    %55 = arith.cmpi slt, %53, %54 : vector<1x128xi32>
    %cst_18 = arith.constant 0xFF800000 : f32
    %56 = vector.shape_cast %55 : vector<1x128xi1> to vector<1x128xi1>
    %57 = vector.broadcast %56 : vector<1x128xi1> to vector<8x128xi1>
    %58 = vector.broadcast %cst_18 : f32 to vector<8x128xf32>
    %59 = arith.select %57, %41, %58 : vector<8x128xi1>, vector<8x128xf32>
    %cst_19 = arith.constant dense<0xFF800000> : vector<8xf32>
    %60 = vector.multi_reduction <maximumf>, %59, %cst_19 [1] : vector<8x128xf32> to vector<8xf32>
    %61 = vector.shape_cast %60 : vector<8xf32> to vector<8x1xf32>
    %62 = vector.broadcast %61 : vector<8x1xf32> to vector<8x128xf32>
    %63 = arith.cmpf oeq, %59, %62 : vector<8x128xf32>
    %c64_i32_20 = arith.constant 64 : i32
    %64 = vector.shape_cast %53 : vector<1x128xi32> to vector<1x128xi32>
    %65 = vector.broadcast %64 : vector<1x128xi32> to vector<8x128xi32>
    %66 = vector.broadcast %c64_i32_20 : i32 to vector<8x128xi32>
    %67 = arith.select %63, %65, %66 : vector<8x128xi1>, vector<8x128xi32>
    %cst_21 = arith.constant dense<2147483647> : vector<8xi32>
    %68 = vector.multi_reduction <minsi>, %67, %cst_21 [1] : vector<8x128xi32> to vector<8xi32>
    %69 = vector.shape_cast %68 : vector<8xi32> to vector<8x1xi32>
    %c0_22 = arith.constant 0 : index
    %c0_23 = arith.constant 0 : index
    %70 = vector.load %arg5[%c0_22, %c0_23] : memref<8x1xf32, #tpu.memory_space<vmem>>, vector<8x1xf32>
    %71 = arith.cmpf ogt, %61, %70 : vector<8x1xf32>
    %c0_24 = arith.constant 0 : index
    %c0_25 = arith.constant 0 : index
    %72 = vector.load %arg5[%c0_24, %c0_25] : memref<8x1xf32, #tpu.memory_space<vmem>>, vector<8x1xf32>
    %73 = arith.select %71, %61, %72 : vector<8x1xi1>, vector<8x1xf32>
    %c0_26 = arith.constant 0 : index
    %c0_27 = arith.constant 0 : index
    %74 = vector.load %arg5[%c0_26, %c0_27] : memref<8x1xf32, #tpu.memory_space<vmem>>, vector<8x1xf32>
    tpu.vector_store %arg5[%c0_26, %c0_27], %73 {strides = array<i32>} : memref<8x1xf32, #tpu.memory_space<vmem>>, vector<8x1xf32>,
    %c0_28 = arith.constant 0 : index
    %c0_29 = arith.constant 0 : index
    %75 = vector.load %arg4[%c0_28, %c0_29] : memref<8x1xi32, #tpu.memory_space<vmem>>, vector<8x1xi32>
    %76 = arith.select %71, %69, %75 : vector<8x1xi1>, vector<8x1xi32>
    %c0_30 = arith.constant 0 : index
    %c0_31 = arith.constant 0 : index
    %77 = vector.load %arg4[%c0_30, %c0_31] : memref<8x1xi32, #tpu.memory_space<vmem>>, vector<8x1xi32>
    tpu.vector_store %arg4[%c0_30, %c0_31], %76 {strides = array<i32>} : memref<8x1xi32, #tpu.memory_space<vmem>>, vector<8x1xi32>,
    return
  }
  func.func @transform_0(%arg0: i32) -> (i32, i32) {
    %c0_i32 = arith.constant 0 : i32
    %c0_i32_0 = arith.constant 0 : i32
    return %c0_i32, %arg0 : i32, i32
  }
  func.func @transform_1(%arg0: i32) -> (i32, i32) {
    %c0_i32 = arith.constant 0 : i32
    %c0_i32_0 = arith.constant 0 : i32
    %c0_i32_1 = arith.constant 0 : i32
    return %c0_i32, %c0_i32_0 : i32, i32
  }
  func.func @transform_2(%arg0: i32) -> (i32, i32) {
    %c0_i32 = arith.constant 0 : i32
    %c0_i32_0 = arith.constant 0 : i32
    return %c0_i32, %arg0 : i32, i32
  }
  func.func @transform_3(%arg0: i32) -> (i32, i32) {
    %c0_i32 = arith.constant 0 : i32
    %c0_i32_0 = arith.constant 0 : i32
    %c0_i32_1 = arith.constant 0 : i32
    return %c0_i32, %c0_i32_0 : i32, i32
  }
}

</mosaic_0001>

<llo_original>
// kernel: tpu_custom_call.1
$region0: #{tpu_custom_call.1}
  #allocation0 [shape = 'u32[]', space=smem, size = 0x4, offset = 0x4, fixed_abs, tag = 'smem constant byte address 0x4 - core index']
  #allocation1 [shape = 'u32[72,128]{1,0:T(1,128)}', space=vmem, size = 0x9000, scoped, tag = 'internal scratch']
  #allocation2 [shape = 'f32[8,1]{1,0:T(8,128)}', space=vmem, size = 0x1000, scoped, tag = 'scratch operand']
  %s0 = inlined_call_operand.vmem [shape: f32[4,128], index: 0, kind: input, shape index: {}]
  %s1 = inlined_call_operand.vmem [shape: f32[8,4], index: 1, kind: input, shape index: {}]
  %s2 = inlined_call_operand.hbm [shape: s32[1,128], index: 2, kind: output, shape index: {0}]
  %s3 = inlined_call_operand.vmem [shape: s32[8,1], index: 3, kind: output, shape index: {1}]
  %4 = xla_tuple %s2, %s3
  %s5 = sld [smem:[#allocation0]]
  $region30: #{tpu_custom_call.1} parent=0
    _
  %s7 = ssub.s32 1, %s5
  %s8 = scalar_select 0, %s7, %s5
  $region1: #{tpu_custom_call.1} parent=0
    #allocation3 [shape = 'u8[512]{0}', space=vmem, size = 0x400, scoped, tag = 'output window, operand 0, single buffered']
    #allocation4 [shape = 's32[1]{0}', space=sflag, size = 0x4, scoped, tag = 'scoped memory for tpu_custom_call.1']
    %9 = vsyncpa [#allocation4], 0
    // Predicated region
    $region2: #{tpu_custom_call.1} parent=1 // pred_check
      _
    $region3: #{tpu_custom_call.1} parent=1 // pred_check_branch
      %11 = sbr.rel (0) target = $region5
    $region4: #{tpu_custom_call.1} parent=1 // pred_region
      _
    $region5: #{tpu_custom_call.1} parent=1 // pred_fallthru
      _
    // Predicated region
    $region6: #{tpu_custom_call.1} parent=1 // pred_check
      _
    $region7: #{tpu_custom_call.1} parent=1 // pred_check_branch
      %13 = sbr.rel (0) target = $region9
    $region8: #{tpu_custom_call.1} parent=1 // pred_region
      _
    $region9: #{tpu_custom_call.1} parent=1 // pred_fallthru
      _
    %p14 = scmp.eq.s32.totalorder 0, 0
    // Predicated region
    $region10: #{tpu_custom_call.1} parent=1 // pred_check
      %p15 = pneg %p14
    $region11: #{tpu_custom_call.1} parent=1 // pred_check_branch
      %17 = sbr.rel (%p15) target = $region13
    $region12: #{tpu_custom_call.1} parent=1 // pred_region
      %vm18 = vcmask 7168
      %19 = vst.msk [vmem:[#allocation2] sm:$0xff] %vm18, -inf
      %20 = vst.msk [vmem:[%s3] sm:$0xff] %vm18, 0
    $region13: #{tpu_custom_call.1} parent=1 // pred_fallthru
      _
    %v21 = vld [vmem:[%s0] sm:$0x1]
    %v22 = vld [vmem:[%s0 + $0x1] sm:$0x1]
    %v23 = vld [vmem:[%s0 + $0x2] sm:$0x1]
    %v24 = vld [vmem:[%s0 + $0x3] sm:$0x1]
    %v25 = vld [vmem:[%s1] sm:$0xff]
    %v26 = vperm.slane %v23, 0
    %28 = vset.pattern.permute.xlu0 2
    %29 = vperm.xlu0 %28, %v25
    %v30 = vpop.permute.xlu0 %29
    %v32 = vmin.f32 %v26, %v30
    %v33 = vperm.slane %v21, 0
    %34 = vset.pattern.permute.xlu0 0
    %35 = vperm.xlu0 %34, %v25
    %v36 = vpop.permute.xlu0 %35
    %v38 = vmax.f32 %v33, %v36
    %v39 = vsub.f32 %v32, %v38
    %v40 = vmax.f32 %v39, 0.0
    %v41 = vperm.slane %v24, 0
    %42 = vset.pattern.permute.xlu0 3
    %43 = vperm.xlu0 %42, %v25
    %v44 = vpop.permute.xlu0 %43
    %v46 = vmin.f32 %v41, %v44
    %v47 = vperm.slane %v22, 0
    %48 = vset.pattern.permute.xlu0 1
    %49 = vperm.xlu0 %48, %v25
    %v50 = vpop.permute.xlu0 %49
    %v52 = vmax.f32 %v47, %v50
    %v53 = vsub.f32 %v46, %v52
    %v54 = vmax.f32 %v53, 0.0
    %v55 = vmul.f32 %v40, %v54
    %v56 = vsub.f32 %v23, %v21
    %v57 = vsub.f32 %v24, %v22
    %v58 = vmul.f32 %v56, %v57
    %59 = vrot.lane.b32.xlu0 %v25, 2
    %v60 = vpop.permute.xlu0 %59
    %v62 = vsub.f32 %v25, %v60
    %64 = vrot.lane.b32.xlu0 %v62, 127
    %v65 = vpop.permute.xlu0 %64
    %v67 = vmul.f32 %v62, %v65
    %v68 = vperm.slane %v58, 0
    %70 = vset.pattern.permute.xlu0 2
    %71 = vperm.xlu0 %70, %v67
    %v72 = vpop.permute.xlu0 %71
    %v74 = vadd.f32 %v68, %v72
    %v75 = vsub.f32 %v74, %v55
    %v76 = vrcp.pop %v75
    %v77 = vmul.f32 %v75, %v76
    %v78 = vsub.f32 1.0, %v77
    %v79 = vmul.f32 %v76, %v78
    %v80 = vadd.f32 %v76, %v79
    %vm81 = vweird.f32 %v75
    %vm82 = vweird.f32 %v76
    %vm83 = vmor %vm81, %vm82
    %v84 = vsel %vm83, %v76, %v80
    %v85 = vand.u32 2147483647, %v75
    %vm86 = vcmp.eq.f32.partialorder %v85, 8.507059e+37
    %v87 = vand.u32 %v75, 2147483648
    %v88 = vor.u32 1.1754944e-38, %v87
    %v89 = vsel %vm86, %v88, %v84
    %v90 = vmul.f32 %v55, %v89
    %v91 = vrot.slane %v90, 4
    %v92 = vmax.f32 %v90, %v91
    %v93 = vrot.slane %v92, 2
    %v94 = vmax.f32 %v92, %v93
    %v95 = vrot.slane %v94, 1
    %v96 = vmax.f32 %v94, %v95
    %vm97 = vcmp.lt.f32.partialorder %v96, 0.3
    %v98 = vsel %vm97, 4294967295, 4294967294
    %99 = vst [vmem:[#allocation3] sm:$0x1] %v98
    %v100 = vlaneseq
    %v101 = vand.u32 %v100, 127
    %s102 = smul.u32 0, 128
    %v103 = vstv %s102
    %v104 = vadd.s32 %v103, %v101
    %vm105 = vcmp.lt.s32.totalorder %v104, 64
    %v106 = vsel %vm105, 1, 0
    %vm107 = vcmp.eq.s32.totalorder %v106, 1
    %v108 = vsel %vm107, %v90, -inf
    %109 = vmax.xlane.f32.xlu0 %v108
    %v110 = vpop.xlane.xlu0 %109
    %vm111 = vcmp.eq.f32.partialorder %v108, %v110
    %v112 = vsel %vm111, %v104, 64
    %v113 = vand.u32 %v112, 65535
    %v114 = vshra.s32 %v112, 16
    %v115 = vcvt.s32.f32 %v113
    %v116 = vcvt.s32.f32 %v114
    %117 = vmin.xlane.f32.xlu0 %v116
    %v118 = vpop.xlane.xlu0 %117
    %vm119 = vcmp.eq.f32.partialorder %v116, %v118
    %v120 = vsel %vm119, %v115, inf
    %121 = vmin.xlane.f32.xlu0 %v120
    %v122 = vpop.xlane.xlu0 %121
    %v123 = vcvt.f32.s32 %v122
    %v124 = vcvt.f32.s32 %v118
    %v125 = vshll.u32 %v124, 16
    %v126 = vadd.s32 %v125, %v123
    %v127 = vld [vmem:[#allocation2] sm:$0xff]
    %vm128 = vcmp.gt.f32.partialorder %v110, %v127
    %v129 = vsel %vm128, %v110, %v127
    %vm130 = vcmask 7168
    %131 = vst.msk [vmem:[#allocation2] sm:$0xff] %vm130, %v129
    %v132 = vld [vmem:[%s3] sm:$0xff]
    %v133 = vsel %vm128, %v126, %v132
    %134 = vst.msk [vmem:[%s3] sm:$0xff] %vm130, %v133
    // Predicated region
    $region14: #{tpu_custom_call.1} parent=1 // pred_check
      _
    $region15: #{tpu_custom_call.1} parent=1 // pred_check_branch
      %136 = sbr.rel (0) target = $region17
    $region16: #{tpu_custom_call.1} parent=1 // pred_region
      %138 = vsyncadd [#allocation4], 0
      %s140 = sshll.u32 [#allocation3], 4
      %s141 = int_to_ptr.vmem [resolvable:$true] %s140
      %s142 = sshll.u32 %s2, 4
      %s143 = int_to_ptr.hbm [resolvable:$true] %s142
      %145 = dma.vmem_to_hbm [thread:$0]  %s141, 16, %s143, [#allocation4]
    $region17: #{tpu_custom_call.1} parent=1 // pred_fallthru
      _
    // Predicated region
    $region18: #{tpu_custom_call.1} parent=1 // pred_check
      _
    $region19: #{tpu_custom_call.1} parent=1 // pred_check_branch
      %147 = sbr.rel (0) target = $region21
    $region20: #{tpu_custom_call.1} parent=1 // pred_region
      _
    $region21: #{tpu_custom_call.1} parent=1 // pred_fallthru
      _
    // Predicated region
    $region22: #{tpu_custom_call.1} parent=1 // pred_check
      _
    $region23: #{tpu_custom_call.1} parent=1 // pred_check_branch
      %149 = sbr.rel (0) target = $region25
    $region24: #{tpu_custom_call.1} parent=1 // pred_region
      %151 = dma.done [#allocation4], 16
    $region25: #{tpu_custom_call.1} parent=1 // pred_fallthru
      _
    // Predicated region
    $region26: #{tpu_custom_call.1} parent=1 // pred_check
      _
    $region27: #{tpu_custom_call.1} parent=1 // pred_check_branch
      %153 = sbr.rel (0) target = $region29
    $region28: #{tpu_custom_call.1} parent=1 // pred_region
      _
    $region29: #{tpu_custom_call.1} parent=1 // pred_fallthru
      _
    %154 = vsyncpa [#allocation4], 1

</llo_original>
